<compile_context>
chip_gen: v5e
topology: v5e:2x2
jax: 0.10.0
libtpu: 0.0.40
codegen_flags: <defaults>
</compile_context>

<pallas_src>
import jax
import jax.numpy as jnp
from jax.experimental import pallas as pl
from jax.experimental.pallas import tpu as pltpu

LANE = 128


def _round_up(x, m):
    return ((x + m - 1) // m) * m


def _choose_tm(M, tm_max=512):
    """Pick the row tile.

    Big tiles amortize the ~0.35us per-grid-step overhead (measured 29% -> 85%
    of HBM roofline moving 128 -> 512).  Prefer a tile that divides M exactly
    (multiple of 16 first for bf16 sublane packing, then multiple of 8);
    otherwise fall back to a multiple-of-16 tile with a ragged last block
    (OOB input rows are garbage, OOB output rows are dropped - per-row math,
    so harmless).
    """
    tm = min(tm_max, _round_up(M, 16))
    if M % tm == 0:
        return tm
    lo = max(tm // 2, 8)
    for step in (16, 8):
        start = tm - (tm % step)
        for cand in range(start, lo - 1, -step):
            if cand >= 8 and M % cand == 0:
                return cand
    return tm


def _sigmoid(y):
    # exp goes to the EUP slot; the approximate reciprocal keeps the divide
    # off the VPU (VALU) slot as well.
    return pl.reciprocal(1.0 + jnp.exp(-y), approx=True)


# --------------------------------------------------------------------------
# Generic fused MLP (mirrors the PyTorch MLP module) - one pallas_call.
# --------------------------------------------------------------------------
def _mlp_kernel(acts, compute_dtype):
    acts = tuple(acts)

    def kernel(x_ref, *refs):
        o_ref = refs[-1]
        h = x_ref[...]                       # (tm, D) bf16, stays on-chip
        y = None
        p = 0
        for act in acts:
            w_ref, b_ref = refs[p], refs[p + 1]
            p += 2
            y = jnp.dot(h, w_ref[...], preferred_element_type=jnp.float32)
            y = y + b_ref[...]               # f32 epilogue
            if act == "relu":
                y = jnp.maximum(y, 0.0)
            elif act == "sigmoid":
                y = _sigmoid(y)
            h = y.astype(compute_dtype)      # next-layer MXU input
        o_ref[...] = y.astype(o_ref.dtype)

    return kernel


def fused_mlp(x2, layers, acts, *, tm=512, compute_dtype=jnp.bfloat16,
              out_dtype=jnp.float32):
    """Run a whole MLP (all Linear layers + activations) in ONE pallas_call.

    layers: [(w, b), ...] with w:(in, out) f32, b:(out,) or (1, out) f32.
    acts  : per-layer activation, "relu" | "none" | "sigmoid".
    """
    assert len(layers) == len(acts)
    M, D = x2.shape
    tm = _choose_tm(M, tm)
    x2 = x2.astype(compute_dtype)

    n_real = layers[-1][0].shape[1]
    n_pad = _round_up(n_real, LANE)          # lane-dense (unmasked) stores

    flat = []
    in_specs = [pl.BlockSpec((tm, D), lambda i: (i, 0))]
    for li, (w, b) in enumerate(layers):
        k_in, n_out = w.shape
        b = jnp.reshape(b, (1, n_out)).astype(jnp.float32)
        if li == len(layers) - 1 and n_pad != n_out:
            w = jnp.pad(w, ((0, 0), (0, n_pad - n_out)))
            b = jnp.pad(b, ((0, 0), (0, n_pad - n_out)))
            n_out = n_pad
        flat += [w.astype(compute_dtype), b]
        # Constant index_map -> weights/biases fetched once, kept in VMEM.
        in_specs += [pl.BlockSpec((k_in, n_out), lambda i: (0, 0)),
                     pl.BlockSpec((1, n_out), lambda i: (0, 0))]

    out = pl.pallas_call(
        _mlp_kernel(acts, compute_dtype),
        out_shape=jax.ShapeDtypeStruct((M, n_pad), out_dtype),
        grid=(pl.cdiv(M, tm),),
        in_specs=in_specs,
        out_specs=pl.BlockSpec((tm, n_pad), lambda i: (i, 0)),
        compiler_params=pltpu.CompilerParams(
            dimension_semantics=("parallel",)),
    )(x2, *flat)
    return out[:, :n_real]


# --------------------------------------------------------------------------
# DETRHOI prediction heads: all four heads fused in ONE pallas_call.
# --------------------------------------------------------------------------
def _detr_heads_kernel(C_cls, Dh, compute_dtype):
    def kernel(x_ref, w1_ref, b1_ref, ws2_ref, bs2_ref, wo2_ref, bo2_ref,
               w3s_ref, w3o_ref, b3_ref, o_ref):
        x = x_ref[...]
        # Layer 1 of all four heads: one wide MXU matmul.
        y1 = jnp.dot(x, w1_ref[...],
                     preferred_element_type=jnp.float32) + b1_ref[...]
        # obj / verb class logits -> first C_cls (128-aligned) output columns.
        o_ref[:, :C_cls] = y1[:, :C_cls].astype(o_ref.dtype)
        # bbox MLP hidden states (padded to Dh -> 128-aligned static slices).
        h_s = jnp.maximum(y1[:, C_cls:C_cls + Dh], 0.0).astype(compute_dtype)
        h_o = jnp.maximum(y1[:, C_cls + Dh:C_cls + 2 * Dh],
                          0.0).astype(compute_dtype)
        h_s = jnp.maximum(
            jnp.dot(h_s, ws2_ref[...], preferred_element_type=jnp.float32)
            + bs2_ref[...], 0.0).astype(compute_dtype)
        h_o = jnp.maximum(
            jnp.dot(h_o, wo2_ref[...], preferred_element_type=jnp.float32)
            + bo2_ref[...], 0.0).astype(compute_dtype)
        # Both 4-wide box outputs share ONE 128-wide segment (block-diagonal
        # final layer written as two accumulating dots): same MAC count,
        # 25% less f32 writeback than two separately padded box heads.
        y3 = (jnp.dot(h_s, w3s_ref[...], preferred_element_type=jnp.float32)
              + jnp.dot(h_o, w3o_ref[...], preferred_element_type=jnp.float32)
              + b3_ref[...])
        o_ref[:, C_cls:] = _sigmoid(y3).astype(o_ref.dtype)

    return kernel


def _detr_heads_call(x2, p, C_cls, Dh, *, tm=512, compute_dtype=jnp.bfloat16,
                     out_dtype=jnp.float32):
    M, D = x2.shape
    tm = _choose_tm(M, tm)
    n_out = C_cls + LANE
    x2 = x2.astype(compute_dtype)

    args = [p["w1"], p["b1"], p["ws2"], p["bs2"], p["wo2"], p["bo2"],
            p["w3s"], p["w3o"], p["b3"]]
    return pl.pallas_call(
        _detr_heads_kernel(C_cls, Dh, compute_dtype),
        out_shape=jax.ShapeDtypeStruct((M, n_out), out_dtype),
        grid=(pl.cdiv(M, tm),),
        in_specs=[pl.BlockSpec((tm, D), lambda i: (i, 0))]
                 + [pl.BlockSpec(a.shape, lambda i: (0, 0)) for a in args],
        out_specs=pl.BlockSpec((tm, n_out), lambda i: (i, 0)),
        compiler_params=pltpu.CompilerParams(
            dimension_semantics=("parallel",)),
    )(x2, *args)


# --------------------------------------------------------------------------
# Modules
# --------------------------------------------------------------------------
def _init_linear(key, n_in, n_out):
    """PyTorch nn.Linear default init; weight stored (in, out) = W^T."""
    wk, bk = jax.random.split(key)
    bound = 1.0 / (n_in ** 0.5)
    w = jax.random.uniform(wk, (n_in, n_out), jnp.float32, -bound, bound)
    b = jax.random.uniform(bk, (1, n_out), jnp.float32, -bound, bound)
    return w, b


class MLPPallas:
    """Mirror of the PyTorch MLP module: num_layers Linear, ReLU between,
    fused into a single pallas_call."""

    def __init__(self, input_dim, hidden_dim, output_dim, num_layers, key):
        self.num_layers = num_layers
        h = [hidden_dim] * (num_layers - 1)
        self.layers = []
        for n, k in zip([input_dim] + h, h + [output_dim]):
            key, lk = jax.random.split(key)
            self.layers.append(_init_linear(lk, n, k))
        self.acts = ["relu"] * (num_layers - 1) + ["none"]

    def __call__(self, x):
        lead = x.shape[:-1]
        x2 = x.reshape((-1, x.shape[-1]))
        y = fused_mlp(x2, self.layers, self.acts)
        return y.reshape(lead + (y.shape[-1],))


class DETRHOIHeadsPallas:
    """DETRHOI prediction heads applied to the decoder output hs: obj/verb
    class Linear, both 3-layer bbox MLPs and their .sigmoid(), all fused into
    ONE pallas_call over the (only) returned decoder layer hs[-1]."""

    def __init__(self, hidden_dim, num_obj_classes, num_verb_classes, key,
                 compute_dtype=jnp.bfloat16):
        D = hidden_dim
        keys = jax.random.split(key, 8)
        # Raw f32 parameters (kept for reference math / checkpoint loading).
        self.obj_class = [_init_linear(keys[0], D, num_obj_classes + 1)]
        self.verb_class = [_init_linear(keys[1], D, num_verb_classes)]
        self.sub_bbox = [_init_linear(keys[2], D, D),
                         _init_linear(keys[3], D, D),
                         _init_linear(keys[4], D, 4)]
        self.obj_bbox = [_init_linear(keys[5], D, D),
                         _init_linear(keys[6], D, D),
                         _init_linear(keys[7], D, 4)]

        self.D = D
        self.no1 = num_obj_classes + 1
        self.nv = num_verb_classes
        self.C1 = _round_up(self.no1, LANE)   # obj-logit output segment
        self.C2 = _round_up(self.nv, LANE)    # verb-logit output segment
        self.Dh = _round_up(D, LANE)          # bbox hidden segment (padded)
        self.compute_dtype = compute_dtype

        cdt = compute_dtype
        C1, C2, Dh = self.C1, self.C2, self.Dh

        def padw(w, n):
            return jnp.pad(w, ((0, 0), (0, n - w.shape[1])))

        def padb(b, n):
            return jnp.pad(b, ((0, 0), (0, n - b.shape[1])))

        (ow, ob), (vw, vb) = self.obj_class[0], self.verb_class[0]
        (sw1, sb1), (sw2, sb2), (sw3, sb3) = self.sub_bbox
        (qw1, qb1), (qw2, qb2), (qw3, qb3) = self.obj_bbox

        # Layer 1 of all heads, column-concatenated (128-aligned segments).
        w1 = jnp.concatenate(
            [padw(ow, C1), padw(vw, C2), padw(sw1, Dh), padw(qw1, Dh)], axis=1)
        b1 = jnp.concatenate(
            [padb(ob, C1), padb(vb, C2), padb(sb1, Dh), padb(qb1, Dh)], axis=1)

        def pad_hidden(w, b):   # (D, D) -> (Dh, Dh); zero rows/cols are inert
            return jnp.pad(w, ((0, Dh - D), (0, Dh - D))), padb(b, Dh)

        ws2, bs2 = pad_hidden(sw2, sb2)
        wo2, bo2 = pad_hidden(qw2, qb2)

        # Final bbox layers: block-diagonal into one 128-wide output segment
        # (sub boxes -> cols 0:4, obj boxes -> cols 4:8).
        w3s = jnp.zeros((Dh, LANE), jnp.float32).at[:D, 0:4].set(sw3)
        w3o = jnp.zeros((Dh, LANE), jnp.float32).at[:D, 4:8].set(qw3)
        b3 = (jnp.zeros((1, LANE), jnp.float32)
              .at[:, 0:4].set(sb3).at[:, 4:8].set(qb3))

        self.packed = {
            "w1": w1.astype(cdt), "b1": b1.astype(jnp.float32),
            "ws2": ws2.astype(cdt), "bs2": bs2.astype(jnp.float32),
            "wo2": wo2.astype(cdt), "bo2": bo2.astype(jnp.float32),
            "w3s": w3s.astype(cdt), "w3o": w3o.astype(cdt),
            "b3": b3.astype(jnp.float32),
        }

    def __call__(self, hs):
        # hs: (num_decoder_layers, batch, num_queries, hidden_dim).
        # The original forward runs every head over ALL decoder layers and
        # keeps only [-1]; only that layer is computed here (identical
        # returned outputs, ~num_dec_layers x less work).  Pass individual
        # layers yourself if aux outputs are ever needed.
        x = hs[-1]
        lead = x.shape[:-1]
        x2 = x.reshape((-1, x.shape[-1]))
        out = _detr_heads_call(x2, self.packed, self.C1 + self.C2, self.Dh,
                               compute_dtype=self.compute_dtype)
        C = self.C1 + self.C2

        def seg(lo, n):
            return out[:, lo:lo + n].reshape(lead + (n,))

        return {
            "pred_obj_logits": seg(0, self.no1),
            "pred_verb_logits": seg(self.C1, self.nv),
            "pred_sub_boxes": seg(C, 4),
            "pred_obj_boxes": seg(C + 4, 4),
        }


# --------------------------------------------------------------------------
# Pure-JAX reference (mirrors the kernels' bf16-in / f32-accumulate math)
# --------------------------------------------------------------------------
def _ref_head(x2, layers, acts, compute_dtype=jnp.bfloat16):
    h = x2.astype(compute_dtype).astype(jnp.float32)
    y = h
    for (w, b), act in zip(layers, acts):
        w32 = w.astype(compute_dtype).astype(jnp.float32)
        y = h @ w32 + jnp.reshape(b, (1, -1))
        if act == "relu":
            y = jnp.maximum(y, 0.0)
        elif act == "sigmoid":
            y = 1.0 / (1.0 + jnp.exp(-y))
        h = y.astype(compute_dtype).astype(jnp.float32)
    return y


if __name__ == "__main__":
    key = jax.random.PRNGKey(0)
    key, hkey, mkey, pkey = jax.random.split(key, 4)

    # Small DETR-HOI-like shapes: 2 decoder layers, batch 2, 100 queries,
    # hidden 64 (real model: 6 layers / 256 hidden / 80+117 classes - same
    # kernels, bigger blocks).
    num_dec_layers, batch, num_queries, hidden_dim = 2, 2, 100, 64
    num_obj_classes, num_verb_classes = 12, 10

    hs = jax.random.normal(
        hkey, (num_dec_layers, batch, num_queries, hidden_dim), jnp.float32)

    # --- standalone MLP (matches the PyTorch MLP module semantics) ---------
    mlp = MLPPallas(hidden_dim, hidden_dim, 4, 3, mkey)
    mlp_out = jax.block_until_ready(mlp(hs))
    mlp_ref = _ref_head(hs.reshape(-1, hidden_dim), mlp.layers, mlp.acts)
    mlp_ref = mlp_ref.reshape(hs.shape[:-1] + (4,))
    assert mlp_out.shape == (num_dec_layers, batch, num_queries, 4)
    assert jnp.allclose(mlp_out, mlp_ref, atol=2e-2, rtol=2e-2)

    # --- full DETRHOI prediction-head stack, fused in one pallas_call ------
    heads = DETRHOIHeadsPallas(hidden_dim, num_obj_classes, num_verb_classes,
                               pkey)
    out = jax.block_until_ready(heads(hs))

    x2 = hs[-1].reshape(-1, hidden_dim)   # only the returned decoder layer
    refs = {
        "pred_obj_logits": _ref_head(x2, heads.obj_class, ["none"]),
        "pred_verb_logits": _ref_head(x2, heads.verb_class, ["none"]),
        "pred_sub_boxes": _ref_head(x2, heads.sub_bbox,
                                    ["relu", "relu", "sigmoid"]),
        "pred_obj_boxes": _ref_head(x2, heads.obj_bbox,
                                    ["relu", "relu", "sigmoid"]),
    }
    for name, ref in refs.items():
        ref = ref.reshape((batch, num_queries, ref.shape[-1]))
        got = out[name]
        assert got.shape == ref.shape, (name, got.shape, ref.shape)
        assert jnp.allclose(got, ref, atol=2e-2, rtol=2e-2), name

    print("KERNEL_OK")
</pallas_src>

<mosaic_0001>
module attributes {stable_mosaic.version = 11 : i64} {
  func.func @kernel(%arg0: i32, %arg1: memref<400x64xbf16, #tpu.memory_space<vmem>>, %arg2: memref<64x64xbf16, #tpu.memory_space<vmem>>, %arg3: memref<1x64xf32, #tpu.memory_space<vmem>>, %arg4: memref<64x64xbf16, #tpu.memory_space<vmem>>, %arg5: memref<1x64xf32, #tpu.memory_space<vmem>>, %arg6: memref<64x128xbf16, #tpu.memory_space<vmem>>, %arg7: memref<1x128xf32, #tpu.memory_space<vmem>>, %arg8: memref<400x128xf32, #tpu.memory_space<vmem>>) attributes {dimension_semantics = [#tpu.dimension_semantics<parallel>], iteration_bounds = array<i64: 1>, scalar_prefetch = 0 : i64, scratch_operands = 0 : i64, tpu.core_type = #tpu.core_type<tc>, window_params = [{transform_indices = @transform_0, window_bounds = array<i64: 400, 64>}, {pipeline_mode = #tpu.pipeline_mode<synchronous>, transform_indices = @transform_1, window_bounds = array<i64: 64, 64>}, {pipeline_mode = #tpu.pipeline_mode<synchronous>, transform_indices = @transform_2, window_bounds = array<i64: 1, 64>}, {pipeline_mode = #tpu.pipeline_mode<synchronous>, transform_indices = @transform_3, window_bounds = array<i64: 64, 64>}, {pipeline_mode = #tpu.pipeline_mode<synchronous>, transform_indices = @transform_4, window_bounds = array<i64: 1, 64>}, {pipeline_mode = #tpu.pipeline_mode<synchronous>, transform_indices = @transform_5, window_bounds = array<i64: 64, 128>}, {pipeline_mode = #tpu.pipeline_mode<synchronous>, transform_indices = @transform_6, window_bounds = array<i64: 1, 128>}, {transform_indices = @transform_7, window_bounds = array<i64: 400, 128>}]} {
    %c0 = arith.constant 0 : index
    %c0_0 = arith.constant 0 : index
    %0 = vector.load %arg1[%c0, %c0_0] : memref<400x64xbf16, #tpu.memory_space<vmem>>, vector<400x64xbf16>
    %c0_1 = arith.constant 0 : index
    %c0_2 = arith.constant 0 : index
    %1 = vector.load %arg2[%c0_1, %c0_2] : memref<64x64xbf16, #tpu.memory_space<vmem>>, vector<64x64xbf16>
    %cst = arith.constant dense<0.000000e+00> : vector<400x64xf32>
    %2 = tpu.matmul %0, %1, %cst {dimension_numbers = #tpu.dot_dimension_numbers<[1], [0], [0], [1], [0, 0, 1, 1], [], []>} : vector<400x64xbf16>, vector<64x64xbf16>, vector<400x64xf32> -> vector<400x64xf32>
    %c0_3 = arith.constant 0 : index
    %c0_4 = arith.constant 0 : index
    %3 = vector.load %arg3[%c0_3, %c0_4] : memref<1x64xf32, #tpu.memory_space<vmem>>, vector<1x64xf32>
    %4 = vector.broadcast %3 : vector<1x64xf32> to vector<400x64xf32>
    %5 = arith.addf %2, %4 : vector<400x64xf32>
    %cst_5 = arith.constant 0.000000e+00 : f32
    %6 = vector.broadcast %cst_5 : f32 to vector<400x64xf32>
    %7 = arith.maximumf %5, %6 : vector<400x64xf32>
    %8 = arith.truncf %7 : vector<400x64xf32> to vector<400x64xbf16>
    %c0_6 = arith.constant 0 : index
    %c0_7 = arith.constant 0 : index
    %9 = vector.load %arg4[%c0_6, %c0_7] : memref<64x64xbf16, #tpu.memory_space<vmem>>, vector<64x64xbf16>
    %cst_8 = arith.constant dense<0.000000e+00> : vector<400x64xf32>
    %10 = tpu.matmul %8, %9, %cst_8 {dimension_numbers = #tpu.dot_dimension_numbers<[1], [0], [0], [1], [0, 0, 1, 1], [], []>} : vector<400x64xbf16>, vector<64x64xbf16>, vector<400x64xf32> -> vector<400x64xf32>
    %c0_9 = arith.constant 0 : index
    %c0_10 = arith.constant 0 : index
    %11 = vector.load %arg5[%c0_9, %c0_10] : memref<1x64xf32, #tpu.memory_space<vmem>>, vector<1x64xf32>
    %12 = vector.broadcast %11 : vector<1x64xf32> to vector<400x64xf32>
    %13 = arith.addf %10, %12 : vector<400x64xf32>
    %cst_11 = arith.constant 0.000000e+00 : f32
    %14 = vector.broadcast %cst_11 : f32 to vector<400x64xf32>
    %15 = arith.maximumf %13, %14 : vector<400x64xf32>
    %16 = arith.truncf %15 : vector<400x64xf32> to vector<400x64xbf16>
    %c0_12 = arith.constant 0 : index
    %c0_13 = arith.constant 0 : index
    %17 = vector.load %arg6[%c0_12, %c0_13] : memref<64x128xbf16, #tpu.memory_space<vmem>>, vector<64x128xbf16>
    %cst_14 = arith.constant dense<0.000000e+00> : vector<400x128xf32>
    %18 = tpu.matmul %16, %17, %cst_14 {dimension_numbers = #tpu.dot_dimension_numbers<[1], [0], [0], [1], [0, 0, 1, 1], [], []>} : vector<400x64xbf16>, vector<64x128xbf16>, vector<400x128xf32> -> vector<400x128xf32>
    %c0_15 = arith.constant 0 : index
    %c0_16 = arith.constant 0 : index
    %19 = vector.load %arg7[%c0_15, %c0_16] : memref<1x128xf32, #tpu.memory_space<vmem>>, vector<1x128xf32>
    %20 = vector.broadcast %19 : vector<1x128xf32> to vector<400x128xf32>
    %21 = arith.addf %18, %20 : vector<400x128xf32>
    %c0_17 = arith.constant 0 : index
    %c0_18 = arith.constant 0 : index
    %22 = vector.load %arg8[%c0_17, %c0_18] : memref<400x128xf32, #tpu.memory_space<vmem>>, vector<400x128xf32>
    tpu.vector_store %arg8[%c0_17, %c0_18], %21 {strides = array<i32>} : memref<400x128xf32, #tpu.memory_space<vmem>>, vector<400x128xf32>,
    return
  }
  func.func @transform_0(%arg0: i32) -> (i32, i32) {
    %c0_i32 = arith.constant 0 : i32
    %c0_i32_0 = arith.constant 0 : i32
    return %arg0, %c0_i32 : i32, i32
  }
  func.func @transform_1(%arg0: i32) -> (i32, i32) {
    %c0_i32 = arith.constant 0 : i32
    %c0_i32_0 = arith.constant 0 : i32
    %c0_i32_1 = arith.constant 0 : i32
    return %c0_i32, %c0_i32_0 : i32, i32
  }
  func.func @transform_2(%arg0: i32) -> (i32, i32) {
    %c0_i32 = arith.constant 0 : i32
    %c0_i32_0 = arith.constant 0 : i32
    %c0_i32_1 = arith.constant 0 : i32
    return %c0_i32, %c0_i32_0 : i32, i32
  }
  func.func @transform_3(%arg0: i32) -> (i32, i32) {
    %c0_i32 = arith.constant 0 : i32
    %c0_i32_0 = arith.constant 0 : i32
    %c0_i32_1 = arith.constant 0 : i32
    return %c0_i32, %c0_i32_0 : i32, i32
  }
  func.func @transform_4(%arg0: i32) -> (i32, i32) {
    %c0_i32 = arith.constant 0 : i32
    %c0_i32_0 = arith.constant 0 : i32
    %c0_i32_1 = arith.constant 0 : i32
    return %c0_i32, %c0_i32_0 : i32, i32
  }
  func.func @transform_5(%arg0: i32) -> (i32, i32) {
    %c0_i32 = arith.constant 0 : i32
    %c0_i32_0 = arith.constant 0 : i32
    %c0_i32_1 = arith.constant 0 : i32
    return %c0_i32, %c0_i32_0 : i32, i32
  }
  func.func @transform_6(%arg0: i32) -> (i32, i32) {
    %c0_i32 = arith.constant 0 : i32
    %c0_i32_0 = arith.constant 0 : i32
    %c0_i32_1 = arith.constant 0 : i32
    return %c0_i32, %c0_i32_0 : i32, i32
  }
  func.func @transform_7(%arg0: i32) -> (i32, i32) {
    %c0_i32 = arith.constant 0 : i32
    %c0_i32_0 = arith.constant 0 : i32
    return %arg0, %c0_i32 : i32, i32
  }
}

</mosaic_0001>

<llo_original>
// kernel: tpu_custom_call.1
$region0: #{tpu_custom_call.1}
  #allocation0 [shape = 'u32[]', space=smem, size = 0x4, offset = 0x4, fixed_abs, tag = 'smem constant byte address 0x4 - core index']
  #allocation1 [shape = 'u32[72,128]{1,0:T(1,128)}', space=vmem, size = 0x9000, scoped, tag = 'internal scratch']
  %s0 = inlined_call_operand.vmem [shape: bf16[400,64], index: 0, kind: input, shape index: {}]
  %s1 = inlined_call_operand.vmem [shape: bf16[64,64], index: 1, kind: input, shape index: {}]
  %s2 = inlined_call_operand.vmem [shape: f32[1,64], index: 2, kind: input, shape index: {}]
  %s3 = inlined_call_operand.vmem [shape: bf16[64,64], index: 3, kind: input, shape index: {}]
  %s4 = inlined_call_operand.vmem [shape: f32[1,64], index: 4, kind: input, shape index: {}]
  %s5 = inlined_call_operand.vmem [shape: bf16[64,128], index: 5, kind: input, shape index: {}]
  %s6 = inlined_call_operand.vmem [shape: f32[1,128], index: 6, kind: input, shape index: {}]
  %s7 = inlined_call_operand.hbm [shape: f32[400,128], index: 7, kind: output, shape index: {}]
  %s8 = sld [smem:[#allocation0]]
  $region38: #{tpu_custom_call.1} parent=0
    _
  %s10 = ssub.s32 1, %s8
  %s11 = scalar_select 0, %s10, %s8
  $region1: #{tpu_custom_call.1} parent=0
    #allocation2 [shape = 'u8[204800]{0}', space=vmem, size = 0x32000, scoped, tag = 'output window, operand 0, single buffered']
    #allocation3 [shape = 's32[1]{0}', space=sflag, size = 0x4, scoped, tag = 'scoped memory for tpu_custom_call.1']
    %12 = vsyncpa [#allocation3], 0
    // Predicated region
    $region2: #{tpu_custom_call.1} parent=1 // pred_check
      _
    $region3: #{tpu_custom_call.1} parent=1 // pred_check_branch
      %14 = sbr.rel (0) target = $region5
    $region4: #{tpu_custom_call.1} parent=1 // pred_region
      _
    $region5: #{tpu_custom_call.1} parent=1 // pred_fallthru
      _
    // Predicated region
    $region6: #{tpu_custom_call.1} parent=1 // pred_check
      _
    $region7: #{tpu_custom_call.1} parent=1 // pred_check_branch
      %16 = sbr.rel (0) target = $region9
    $region8: #{tpu_custom_call.1} parent=1 // pred_region
      _
    $region9: #{tpu_custom_call.1} parent=1 // pred_fallthru
      _
    // Predicated region
    $region10: #{tpu_custom_call.1} parent=1 // pred_check
      _
    $region11: #{tpu_custom_call.1} parent=1 // pred_check_branch
      %18 = sbr.rel (0) target = $region13
    $region12: #{tpu_custom_call.1} parent=1 // pred_region
      _
    $region13: #{tpu_custom_call.1} parent=1 // pred_fallthru
      _
    // Predicated region
    $region14: #{tpu_custom_call.1} parent=1 // pred_check
      _
    $region15: #{tpu_custom_call.1} parent=1 // pred_check_branch
      %20 = sbr.rel (0) target = $region17
    $region16: #{tpu_custom_call.1} parent=1 // pred_region
      _
    $region17: #{tpu_custom_call.1} parent=1 // pred_fallthru
      _
    // Predicated region
    $region18: #{tpu_custom_call.1} parent=1 // pred_check
      _
    $region19: #{tpu_custom_call.1} parent=1 // pred_check_branch
      %22 = sbr.rel (0) target = $region21
    $region20: #{tpu_custom_call.1} parent=1 // pred_region
      _
    $region21: #{tpu_custom_call.1} parent=1 // pred_fallthru
      _
    // Predicated region
    $region22: #{tpu_custom_call.1} parent=1 // pred_check
      _
    $region23: #{tpu_custom_call.1} parent=1 // pred_check_branch
      %24 = sbr.rel (0) target = $region25
    $region24: #{tpu_custom_call.1} parent=1 // pred_region
      _
    $region25: #{tpu_custom_call.1} parent=1 // pred_fallthru
      _
    // Predicated region
    $region26: #{tpu_custom_call.1} parent=1 // pred_check
      _
    $region27: #{tpu_custom_call.1} parent=1 // pred_check_branch
      %26 = sbr.rel (0) target = $region29
    $region28: #{tpu_custom_call.1} parent=1 // pred_region
      _
    $region29: #{tpu_custom_call.1} parent=1 // pred_fallthru
      _
    %v28 = vld [vmem:[%s0] sm:$0xf]
    %v29 = vld [vmem:[%s0 + $0x4] sm:$0xf]
    %v30 = vld [vmem:[%s0 + $0x8] sm:$0xf]
    %v31 = vld [vmem:[%s0 + $0xc] sm:$0xf]
    %v32 = vld [vmem:[%s0 + $0x10] sm:$0xf]
    %v33 = vld [vmem:[%s0 + $0x14] sm:$0xf]
    %v34 = vld [vmem:[%s0 + $0x18] sm:$0xf]
    %v35 = vld [vmem:[%s0 + $0x1c] sm:$0xf]
    %v36 = vld [vmem:[%s0 + $0x20] sm:$0xf]
    %v37 = vld [vmem:[%s0 + $0x24] sm:$0xf]
    %v38 = vld [vmem:[%s0 + $0x28] sm:$0xf]
    %v39 = vld [vmem:[%s0 + $0x2c] sm:$0xf]
    %v40 = vld [vmem:[%s0 + $0x30] sm:$0xf]
    %v41 = vld [vmem:[%s0 + $0x34] sm:$0xf]
    %v42 = vld [vmem:[%s0 + $0x38] sm:$0xf]
    %v43 = vld [vmem:[%s0 + $0x3c] sm:$0xf]
    %v44 = vld [vmem:[%s0 + $0x40] sm:$0xf]
    %v45 = vld [vmem:[%s0 + $0x44] sm:$0xf]
    %v46 = vld [vmem:[%s0 + $0x48] sm:$0xf]
    %v47 = vld [vmem:[%s0 + $0x4c] sm:$0xf]
    %v48 = vld [vmem:[%s0 + $0x50] sm:$0xf]
    %v49 = vld [vmem:[%s0 + $0x54] sm:$0xf]
    %v50 = vld [vmem:[%s0 + $0x58] sm:$0xf]
    %v51 = vld [vmem:[%s0 + $0x5c] sm:$0xf]
    %v52 = vld [vmem:[%s0 + $0x60] sm:$0xf]
    %v53 = vld [vmem:[%s0 + $0x64] sm:$0xf]
    %v54 = vld [vmem:[%s0 + $0x68] sm:$0xf]
    %v55 = vld [vmem:[%s0 + $0x6c] sm:$0xf]
    %v56 = vld [vmem:[%s0 + $0x70] sm:$0xf]
    %v57 = vld [vmem:[%s0 + $0x74] sm:$0xf]
    %v58 = vld [vmem:[%s0 + $0x78] sm:$0xf]
    %v59 = vld [vmem:[%s0 + $0x7c] sm:$0xf]
    %v60 = vld [vmem:[%s0 + $0x80] sm:$0xf]
    %v61 = vld [vmem:[%s0 + $0x84] sm:$0xf]
    %v62 = vld [vmem:[%s0 + $0x88] sm:$0xf]
    %v63 = vld [vmem:[%s0 + $0x8c] sm:$0xf]
    %v64 = vld [vmem:[%s0 + $0x90] sm:$0xf]
    %v65 = vld [vmem:[%s0 + $0x94] sm:$0xf]
    %v66 = vld [vmem:[%s0 + $0x98] sm:$0xf]
    %v67 = vld [vmem:[%s0 + $0x9c] sm:$0xf]
    %v68 = vld [vmem:[%s0 + $0xa0] sm:$0xf]
    %v69 = vld [vmem:[%s0 + $0xa4] sm:$0xf]
    %v70 = vld [vmem:[%s0 + $0xa8] sm:$0xf]
    %v71 = vld [vmem:[%s0 + $0xac] sm:$0xf]
    %v72 = vld [vmem:[%s0 + $0xb0] sm:$0xf]
    %v73 = vld [vmem:[%s0 + $0xb4] sm:$0xf]
    %v74 = vld [vmem:[%s0 + $0xb8] sm:$0xf]
    %v75 = vld [vmem:[%s0 + $0xbc] sm:$0xf]
    %v76 = vld [vmem:[%s0 + $0xc0] sm:$0xf]
    %v77 = vld [vmem:[%s0 + $0xc4] sm:$0xf]
    %v78 = vld [vmem:[%s1] sm:$0xf]
    %v79 = vld [vmem:[%s1 + $0x4] sm:$0xf]
    %v80 = vld [vmem:[%s1 + $0x8] sm:$0xf]
    %v81 = vld [vmem:[%s1 + $0xc] sm:$0xf]
    %v82 = vld [vmem:[%s1 + $0x10] sm:$0xf]
    %v83 = vld [vmem:[%s1 + $0x14] sm:$0xf]
    %v84 = vld [vmem:[%s1 + $0x18] sm:$0xf]
    %v85 = vld [vmem:[%s1 + $0x1c] sm:$0xf]
    %v86 = vld [vmem:[%s2] sm:$0x1]
    %v88 = vperm.slane %v86, 0
    %v140 = vunpack.c.l.b16 %v28
    %v141 = vunpack.c.l.b16 %v29
    %v142 = vunpack.c.l.b16 %v30
    %v143 = vunpack.c.l.b16 %v31
    %v144 = vunpack.c.l.b16 %v32
    %v145 = vunpack.c.l.b16 %v33
    %v146 = vunpack.c.l.b16 %v34
    %v147 = vunpack.c.l.b16 %v35
    %v148 = vunpack.c.l.b16 %v36
    %v149 = vunpack.c.l.b16 %v37
    %v150 = vunpack.c.l.b16 %v38
    %v151 = vunpack.c.l.b16 %v39
    %v152 = vunpack.c.l.b16 %v40
    %v153 = vunpack.c.l.b16 %v41
    %v154 = vunpack.c.l.b16 %v42
    %v155 = vunpack.c.l.b16 %v43
    %v156 = vunpack.c.l.b16 %v44
    %v157 = vunpack.c.l.b16 %v45
    %v158 = vunpack.c.l.b16 %v46
    %v159 = vunpack.c.l.b16 %v47
    %v160 = vunpack.c.l.b16 %v48
    %v161 = vunpack.c.l.b16 %v49
    %v162 = vunpack.c.l.b16 %v50
    %v163 = vunpack.c.l.b16 %v51
    %v164 = vunpack.c.l.b16 %v52
    %v165 = vunpack.c.l.b16 %v53
    %v166 = vunpack.c.l.b16 %v54
    %v167 = vunpack.c.l.b16 %v55
    %v168 = vunpack.c.l.b16 %v56
    %v169 = vunpack.c.l.b16 %v57
    %v170 = vunpack.c.l.b16 %v58
    %v171 = vunpack.c.l.b16 %v59
    %v172 = vunpack.c.l.b16 %v60
    %v173 = vunpack.c.l.b16 %v61
    %v174 = vunpack.c.l.b16 %v62
    %v175 = vunpack.c.l.b16 %v63
    %v176 = vunpack.c.l.b16 %v64
    %v177 = vunpack.c.l.b16 %v65
    %v178 = vunpack.c.l.b16 %v66
    %v179 = vunpack.c.l.b16 %v67
    %v180 = vunpack.c.l.b16 %v68
    %v181 = vunpack.c.l.b16 %v69
    %v182 = vunpack.c.l.b16 %v70
    %v183 = vunpack.c.l.b16 %v71
    %v184 = vunpack.c.l.b16 %v72
    %v185 = vunpack.c.l.b16 %v73
    %v186 = vunpack.c.l.b16 %v74
    %v187 = vunpack.c.l.b16 %v75
    %v188 = vunpack.c.l.b16 %v76
    %v189 = vunpack.c.l.b16 %v77
    %v190 = vpack.c.b16 %v141, %v140
    %v191 = vpack.c.b16 %v143, %v142
    %v192 = vpack.c.b16 %v145, %v144
    %v193 = vpack.c.b16 %v147, %v146
    %v194 = vpack.c.b16 %v149, %v148
    %v195 = vpack.c.b16 %v151, %v150
    %v196 = vpack.c.b16 %v153, %v152
    %v197 = vpack.c.b16 %v155, %v154
    %v198 = vpack.c.b16 %v157, %v156
    %v199 = vpack.c.b16 %v159, %v158
    %v200 = vpack.c.b16 %v161, %v160
    %v201 = vpack.c.b16 %v163, %v162
    %v202 = vpack.c.b16 %v165, %v164
    %v203 = vpack.c.b16 %v167, %v166
    %v204 = vpack.c.b16 %v169, %v168
    %v205 = vpack.c.b16 %v171, %v170
    %v206 = vpack.c.b16 %v173, %v172
    %v207 = vpack.c.b16 %v175, %v174
    %v208 = vpack.c.b16 %v177, %v176
    %v209 = vpack.c.b16 %v179, %v178
    %v210 = vpack.c.b16 %v181, %v180
    %v211 = vpack.c.b16 %v183, %v182
    %v212 = vpack.c.b16 %v185, %v184
    %v213 = vpack.c.b16 %v187, %v186
    %v214 = vpack.c.b16 %v189, %v188
    %v223 = vunpack.c.l.b16 %v78
    %v224 = vunpack.c.l.b16 %v79
    %v225 = vunpack.c.l.b16 %v80
    %v226 = vunpack.c.l.b16 %v81
    %v227 = vunpack.c.l.b16 %v82
    %v228 = vunpack.c.l.b16 %v83
    %v229 = vunpack.c.l.b16 %v84
    %v230 = vunpack.c.l.b16 %v85
    %v231 = vpack.c.b16 %v224, %v223
    %v232 = vpack.c.b16 %v226, %v225
    %v233 = vpack.c.b16 %v228, %v227
    %v234 = vpack.c.b16 %v230, %v229
    %vm239 = vcmask 523264
    %v241 = vsel %vm239, %v190, 0
    %v244 = vsel %vm239, %v191, 0
    %v247 = vsel %vm239, %v192, 0
    %v250 = vsel %vm239, %v193, 0
    %v253 = vsel %vm239, %v194, 0
    %v256 = vsel %vm239, %v195, 0
    %v259 = vsel %vm239, %v196, 0
    %v262 = vsel %vm239, %v197, 0
    %v265 = vsel %vm239, %v198, 0
    %v268 = vsel %vm239, %v199, 0
    %v271 = vsel %vm239, %v200, 0
    %v274 = vsel %vm239, %v201, 0
    %v277 = vsel %vm239, %v202, 0
    %v280 = vsel %vm239, %v203, 0
    %v283 = vsel %vm239, %v204, 0
    %v286 = vsel %vm239, %v205, 0
    %v289 = vsel %vm239, %v206, 0
    %v292 = vsel %vm239, %v207, 0
    %v295 = vsel %vm239, %v208, 0
    %v298 = vsel %vm239, %v209, 0
    %v301 = vsel %vm239, %v210, 0
    %v304 = vsel %vm239, %v211, 0
    %v307 = vsel %vm239, %v212, 0
    %v310 = vsel %vm239, %v213, 0
    %v313 = vsel %vm239, %v214, 0
    %315 = vmatpush.bf16.msra.mxu0 0
    %316 = vmatpush.bf16.msra.mxu0 0
    %317 = vmatpush.bf16.msra.mxu0 0
    %318 = vmatpush.bf16.msra.mxu0 0
    %319 = vmatpush.bf16.msra.mxu0 %v234
    %320 = vmatpush.bf16.msra.mxu0 %v233
    %321 = vmatpush.bf16.msra.mxu0 %v232
    %322 = vmatpush.bf16.msra.mxu0 %v231
    %323 = vmatmul.bf16.gmra.mxu0 %v241
    %v324 = vpop.f32.mrf.mxu0
    %v325 = vadd.f32 %v88, %v324
    %v326 = vpop.f32.mrf.mxu0
    %v327 = vadd.f32 %v88, %v326
    %328 = vmatmul.bf16.gmra.mxu0 %v244
    %v329 = vpop.f32.mrf.mxu0
    %v330 = vadd.f32 %v88, %v329
    %v331 = vpop.f32.mrf.mxu0
    %v332 = vadd.f32 %v88, %v331
    %333 = vmatmul.bf16.gmra.mxu0 %v247
    %v334 = vpop.f32.mrf.mxu0
    %v335 = vadd.f32 %v88, %v334
    %v336 = vpop.f32.mrf.mxu0
    %v337 = vadd.f32 %v88, %v336
    %338 = vmatmul.bf16.gmra.mxu0 %v250
    %v339 = vpop.f32.mrf.mxu0
    %v340 = vadd.f32 %v88, %v339
    %v341 = vpop.f32.mrf.mxu0
    %v342 = vadd.f32 %v88, %v341
    %343 = vmatmul.bf16.gmra.mxu0 %v253
    %v344 = vpop.f32.mrf.mxu0
    %v345 = vadd.f32 %v88, %v344
    %v346 = vpop.f32.mrf.mxu0
    %v347 = vadd.f32 %v88, %v346
    %348 = vmatmul.bf16.gmra.mxu0 %v256
    %v349 = vpop.f32.mrf.mxu0
    %v350 = vadd.f32 %v88, %v349
    %v351 = vpop.f32.mrf.mxu0
    %v352 = vadd.f32 %v88, %v351
    %353 = vmatmul.bf16.gmra.mxu0 %v259
    %v354 = vpop.f32.mrf.mxu0
    %v355 = vadd.f32 %v88, %v354
    %v356 = vpop.f32.mrf.mxu0
    %v357 = vadd.f32 %v88, %v356
    %358 = vmatmul.bf16.gmra.mxu0 %v262
    %v359 = vpop.f32.mrf.mxu0
    %v360 = vadd.f32 %v88, %v359
    %v361 = vpop.f32.mrf.mxu0
    %v362 = vadd.f32 %v88, %v361
    %363 = vmatmul.bf16.gmra.mxu0 %v265
    %v364 = vpop.f32.mrf.mxu0
    %v365 = vadd.f32 %v88, %v364
    %v366 = vpop.f32.mrf.mxu0
    %v367 = vadd.f32 %v88, %v366
    %368 = vmatmul.bf16.gmra.mxu0 %v268
    %v369 = vpop.f32.mrf.mxu0
    %v370 = vadd.f32 %v88, %v369
    %v371 = vpop.f32.mrf.mxu0
    %v372 = vadd.f32 %v88, %v371
    %373 = vmatmul.bf16.gmra.mxu0 %v271
    %v374 = vpop.f32.mrf.mxu0
    %v375 = vadd.f32 %v88, %v374
    %v376 = vpop.f32.mrf.mxu0
    %v377 = vadd.f32 %v88, %v376
    %378 = vmatmul.bf16.gmra.mxu0 %v274
    %v379 = vpop.f32.mrf.mxu0
    %v380 = vadd.f32 %v88, %v379
    %v381 = vpop.f32.mrf.mxu0
    %v382 = vadd.f32 %v88, %v381
    %383 = vmatmul.bf16.gmra.mxu0 %v277
    %v384 = vpop.f32.mrf.mxu0
    %v385 = vadd.f32 %v88, %v384
    %v386 = vpop.f32.mrf.mxu0
    %v387 = vadd.f32 %v88, %v386
    %388 = vmatmul.bf16.gmra.mxu0 %v280
    %v389 = vpop.f32.mrf.mxu0
    %v390 = vadd.f32 %v88, %v389
    %v391 = vpop.f32.mrf.mxu0
    %v392 = vadd.f32 %v88, %v391
    %393 = vmatmul.bf16.gmra.mxu0 %v283
    %v394 = vpop.f32.mrf.mxu0
    %v395 = vadd.f32 %v88, %v394
    %v396 = vpop.f32.mrf.mxu0
    %v397 = vadd.f32 %v88, %v396
    %398 = vmatmul.bf16.gmra.mxu0 %v286
    %v399 = vpop.f32.mrf.mxu0
    %v400 = vadd.f32 %v88, %v399
    %v401 = vpop.f32.mrf.mxu0
    %v402 = vadd.f32 %v88, %v401
    %403 = vmatmul.bf16.gmra.mxu0 %v289
    %v404 = vpop.f32.mrf.mxu0
    %v405 = vadd.f32 %v88, %v404
    %v406 = vpop.f32.mrf.mxu0
    %v407 = vadd.f32 %v88, %v406
    %408 = vmatmul.bf16.gmra.mxu0 %v292
    %v409 = vpop.f32.mrf.mxu0
    %v410 = vadd.f32 %v88, %v409
    %v411 = vpop.f32.mrf.mxu0
    %v412 = vadd.f32 %v88, %v411
    %413 = vmatmul.bf16.gmra.mxu0 %v295
    %v414 = vpop.f32.mrf.mxu0
    %v415 = vadd.f32 %v88, %v414
    %v416 = vpop.f32.mrf.mxu0
    %v417 = vadd.f32 %v88, %v416
    %418 = vmatmul.bf16.gmra.mxu0 %v298
    %v419 = vpop.f32.mrf.mxu0
    %v420 = vadd.f32 %v88, %v419
    %v421 = vpop.f32.mrf.mxu0
    %v422 = vadd.f32 %v88, %v421
    %423 = vmatmul.bf16.gmra.mxu0 %v301
    %v424 = vpop.f32.mrf.mxu0
    %v425 = vadd.f32 %v88, %v424
    %v426 = vpop.f32.mrf.mxu0
    %v427 = vadd.f32 %v88, %v426
    %428 = vmatmul.bf16.gmra.mxu0 %v304
    %v429 = vpop.f32.mrf.mxu0
    %v430 = vadd.f32 %v88, %v429
    %v431 = vpop.f32.mrf.mxu0
    %v432 = vadd.f32 %v88, %v431
    %433 = vmatmul.bf16.gmra.mxu0 %v307
    %v434 = vpop.f32.mrf.mxu0
    %v435 = vadd.f32 %v88, %v434
    %v436 = vpop.f32.mrf.mxu0
    %v437 = vadd.f32 %v88, %v436
    %438 = vmatmul.bf16.gmra.mxu0 %v310
    %v439 = vpop.f32.mrf.mxu0
    %v440 = vadd.f32 %v88, %v439
    %v441 = vpop.f32.mrf.mxu0
    %v442 = vadd.f32 %v88, %v441
    %443 = vmatmul.bf16.gmra.mxu0 %v313
    %v444 = vpop.f32.mrf.mxu0
    %v445 = vadd.f32 %v88, %v444
    %v446 = vpop.f32.mrf.mxu0
    %v447 = vadd.f32 %v88, %v446
    %448 = vdwg.mxu0
    %v449 = vmax.f32 %v325, 0.0
    %v450 = vmax.f32 %v327, 0.0
    %v451 = vmax.f32 %v330, 0.0
    %v452 = vmax.f32 %v332, 0.0
    %v453 = vmax.f32 %v335, 0.0
    %v454 = vmax.f32 %v337, 0.0
    %v455 = vmax.f32 %v340, 0.0
    %v456 = vmax.f32 %v342, 0.0
    %v457 = vmax.f32 %v345, 0.0
    %v458 = vmax.f32 %v347, 0.0
    %v459 = vmax.f32 %v350, 0.0
    %v460 = vmax.f32 %v352, 0.0
    %v461 = vmax.f32 %v355, 0.0
    %v462 = vmax.f32 %v357, 0.0
    %v463 = vmax.f32 %v360, 0.0
    %v464 = vmax.f32 %v362, 0.0
    %v465 = vmax.f32 %v365, 0.0
    %v466 = vmax.f32 %v367, 0.0
    %v467 = vmax.f32 %v370, 0.0
    %v468 = vmax.f32 %v372, 0.0
    %v469 = vmax.f32 %v375, 0.0
    %v470 = vmax.f32 %v377, 0.0
    %v471 = vmax.f32 %v380, 0.0
    %v472 = vmax.f32 %v382, 0.0
    %v473 = vmax.f32 %v385, 0.0
    %v474 = vmax.f32 %v387, 0.0
    %v475 = vmax.f32 %v390, 0.0
    %v476 = vmax.f32 %v392, 0.0
    %v477 = vmax.f32 %v395, 0.0
    %v478 = vmax.f32 %v397, 0.0
    %v479 = vmax.f32 %v400, 0.0
    %v480 = vmax.f32 %v402, 0.0
    %v481 = vmax.f32 %v405, 0.0
    %v482 = vmax.f32 %v407, 0.0
    %v483 = vmax.f32 %v410, 0.0
    %v484 = vmax.f32 %v412, 0.0
    %v485 = vmax.f32 %v415, 0.0
    %v486 = vmax.f32 %v417, 0.0
    %v487 = vmax.f32 %v420, 0.0
    %v488 = vmax.f32 %v422, 0.0
    %v489 = vmax.f32 %v425, 0.0
    %v490 = vmax.f32 %v427, 0.0
    %v491 = vmax.f32 %v430, 0.0
    %v492 = vmax.f32 %v432, 0.0
    %v493 = vmax.f32 %v435, 0.0
    %v494 = vmax.f32 %v437, 0.0
    %v495 = vmax.f32 %v440, 0.0
    %v496 = vmax.f32 %v442, 0.0
    %v497 = vmax.f32 %v445, 0.0
    %v498 = vmax.f32 %v447, 0.0
    %v499 = vpack.c.bf16 %v450, %v449
    %v500 = vpack.c.bf16 %v452, %v451
    %v501 = vpack.c.bf16 %v454, %v453
    %v502 = vpack.c.bf16 %v456, %v455
    %v503 = vpack.c.bf16 %v458, %v457
    %v504 = vpack.c.bf16 %v460, %v459
    %v505 = vpack.c.bf16 %v462, %v461
    %v506 = vpack.c.bf16 %v464, %v463
    %v507 = vpack.c.bf16 %v466, %v465
    %v508 = vpack.c.bf16 %v468, %v467
    %v509 = vpack.c.bf16 %v470, %v469
    %v510 = vpack.c.bf16 %v472, %v471
    %v511 = vpack.c.bf16 %v474, %v473
    %v512 = vpack.c.bf16 %v476, %v475
    %v513 = vpack.c.bf16 %v478, %v477
    %v514 = vpack.c.bf16 %v480, %v479
    %v515 = vpack.c.bf16 %v482, %v481
    %v516 = vpack.c.bf16 %v484, %v483
    %v517 = vpack.c.bf16 %v486, %v485
    %v518 = vpack.c.bf16 %v488, %v487
    %v519 = vpack.c.bf16 %v490, %v489
    %v520 = vpack.c.bf16 %v492, %v491
    %v521 = vpack.c.bf16 %v494, %v493
    %v522 = vpack.c.bf16 %v496, %v495
    %v523 = vpack.c.bf16 %v498, %v497
    %v524 = vld [vmem:[%s3] sm:$0xf]
    %v525 = vld [vmem:[%s3 + $0x4] sm:$0xf]
    %v526 = vld [vmem:[%s3 + $0x8] sm:$0xf]
    %v527 = vld [vmem:[%s3 + $0xc] sm:$0xf]
    %v528 = vld [vmem:[%s3 + $0x10] sm:$0xf]
    %v529 = vld [vmem:[%s3 + $0x14] sm:$0xf]
    %v530 = vld [vmem:[%s3 + $0x18] sm:$0xf]
    %v531 = vld [vmem:[%s3 + $0x1c] sm:$0xf]
    %v532 = vld [vmem:[%s4] sm:$0x1]
    %v534 = vperm.slane %v532, 0
    %v544 = vunpack.c.l.b16 %v524
    %v545 = vunpack.c.l.b16 %v525
    %v546 = vunpack.c.l.b16 %v526
    %v547 = vunpack.c.l.b16 %v527
    %v548 = vunpack.c.l.b16 %v528
    %v549 = vunpack.c.l.b16 %v529
    %v550 = vunpack.c.l.b16 %v530
    %v551 = vunpack.c.l.b16 %v531
    %v552 = vpack.c.b16 %v545, %v544
    %v553 = vpack.c.b16 %v547, %v546
    %v554 = vpack.c.b16 %v549, %v548
    %v555 = vpack.c.b16 %v551, %v550
    %v561 = vsel %vm239, %v499, 0
    %v564 = vsel %vm239, %v500, 0
    %v567 = vsel %vm239, %v501, 0
    %v570 = vsel %vm239, %v502, 0
    %v573 = vsel %vm239, %v503, 0
    %v576 = vsel %vm239, %v504, 0
    %v579 = vsel %vm239, %v505, 0
    %v582 = vsel %vm239, %v506, 0
    %v585 = vsel %vm239, %v507, 0
    %v588 = vsel %vm239, %v508, 0
    %v591 = vsel %vm239, %v509, 0
    %v594 = vsel %vm239, %v510, 0
    %v597 = vsel %vm239, %v511, 0
    %v600 = vsel %vm239, %v512, 0
    %v603 = vsel %vm239, %v513, 0
    %v606 = vsel %vm239, %v514, 0
    %v609 = vsel %vm239, %v515, 0
    %v612 = vsel %vm239, %v516, 0
    %v615 = vsel %vm239, %v517, 0
    %v618 = vsel %vm239, %v518, 0
    %v621 = vsel %vm239, %v519, 0
    %v624 = vsel %vm239, %v520, 0
    %v627 = vsel %vm239, %v521, 0
    %v630 = vsel %vm239, %v522, 0
    %v633 = vsel %vm239, %v523, 0
    %635 = vmatpush.bf16.msra.mxu0 0
    %636 = vmatpush.bf16.msra.mxu0 0
    %637 = vmatpush.bf16.msra.mxu0 0
    %638 = vmatpush.bf16.msra.mxu0 0
    %639 = vmatpush.bf16.msra.mxu0 %v555
    %640 = vmatpush.bf16.msra.mxu0 %v554
    %641 = vmatpush.bf16.msra.mxu0 %v553
    %642 = vmatpush.bf16.msra.mxu0 %v552
    %643 = vmatmul.bf16.gmra.mxu0 %v561
    %v644 = vpop.f32.mrf.mxu0
    %v645 = vadd.f32 %v534, %v644
    %v646 = vpop.f32.mrf.mxu0
    %v647 = vadd.f32 %v534, %v646
    %648 = vmatmul.bf16.gmra.mxu0 %v564
    %v649 = vpop.f32.mrf.mxu0
    %v650 = vadd.f32 %v534, %v649
    %v651 = vpop.f32.mrf.mxu0
    %v652 = vadd.f32 %v534, %v651
    %653 = vmatmul.bf16.gmra.mxu0 %v567
    %v654 = vpop.f32.mrf.mxu0
    %v655 = vadd.f32 %v534, %v654
    %v656 = vpop.f32.mrf.mxu0
    %v657 = vadd.f32 %v534, %v656
    %658 = vmatmul.bf16.gmra.mxu0 %v570
    %v659 = vpop.f32.mrf.mxu0
    %v660 = vadd.f32 %v534, %v659
    %v661 = vpop.f32.mrf.mxu0
    %v662 = vadd.f32 %v534, %v661
    %663 = vmatmul.bf16.gmra.mxu0 %v573
    %v664 = vpop.f32.mrf.mxu0
    %v665 = vadd.f32 %v534, %v664
    %v666 = vpop.f32.mrf.mxu0
    %v667 = vadd.f32 %v534, %v666
    %668 = vmatmul.bf16.gmra.mxu0 %v576
    %v669 = vpop.f32.mrf.mxu0
    %v670 = vadd.f32 %v534, %v669
    %v671 = vpop.f32.mrf.mxu0
    %v672 = vadd.f32 %v534, %v671
    %673 = vmatmul.bf16.gmra.mxu0 %v579
    %v674 = vpop.f32.mrf.mxu0
    %v675 = vadd.f32 %v534, %v674
    %v676 = vpop.f32.mrf.mxu0
    %v677 = vadd.f32 %v534, %v676
    %678 = vmatmul.bf16.gmra.mxu0 %v582
    %v679 = vpop.f32.mrf.mxu0
    %v680 = vadd.f32 %v534, %v679
    %v681 = vpop.f32.mrf.mxu0
    %v682 = vadd.f32 %v534, %v681
    %683 = vmatmul.bf16.gmra.mxu0 %v585
    %v684 = vpop.f32.mrf.mxu0
    %v685 = vadd.f32 %v534, %v684
    %v686 = vpop.f32.mrf.mxu0
    %v687 = vadd.f32 %v534, %v686
    %688 = vmatmul.bf16.gmra.mxu0 %v588
    %v689 = vpop.f32.mrf.mxu0
    %v690 = vadd.f32 %v534, %v689
    %v691 = vpop.f32.mrf.mxu0
    %v692 = vadd.f32 %v534, %v691
    %693 = vmatmul.bf16.gmra.mxu0 %v591
    %v694 = vpop.f32.mrf.mxu0
    %v695 = vadd.f32 %v534, %v694
    %v696 = vpop.f32.mrf.mxu0
    %v697 = vadd.f32 %v534, %v696
    %698 = vmatmul.bf16.gmra.mxu0 %v594
    %v699 = vpop.f32.mrf.mxu0
    %v700 = vadd.f32 %v534, %v699
    %v701 = vpop.f32.mrf.mxu0
    %v702 = vadd.f32 %v534, %v701
    %703 = vmatmul.bf16.gmra.mxu0 %v597
    %v704 = vpop.f32.mrf.mxu0
    %v705 = vadd.f32 %v534, %v704
    %v706 = vpop.f32.mrf.mxu0
    %v707 = vadd.f32 %v534, %v706
    %708 = vmatmul.bf16.gmra.mxu0 %v600
    %v709 = vpop.f32.mrf.mxu0
    %v710 = vadd.f32 %v534, %v709
    %v711 = vpop.f32.mrf.mxu0
    %v712 = vadd.f32 %v534, %v711
    %713 = vmatmul.bf16.gmra.mxu0 %v603
    %v714 = vpop.f32.mrf.mxu0
    %v715 = vadd.f32 %v534, %v714
    %v716 = vpop.f32.mrf.mxu0
    %v717 = vadd.f32 %v534, %v716
    %718 = vmatmul.bf16.gmra.mxu0 %v606
    %v719 = vpop.f32.mrf.mxu0
    %v720 = vadd.f32 %v534, %v719
    %v721 = vpop.f32.mrf.mxu0
    %v722 = vadd.f32 %v534, %v721
    %723 = vmatmul.bf16.gmra.mxu0 %v609
    %v724 = vpop.f32.mrf.mxu0
    %v725 = vadd.f32 %v534, %v724
    %v726 = vpop.f32.mrf.mxu0
    %v727 = vadd.f32 %v534, %v726
    %728 = vmatmul.bf16.gmra.mxu0 %v612
    %v729 = vpop.f32.mrf.mxu0
    %v730 = vadd.f32 %v534, %v729
    %v731 = vpop.f32.mrf.mxu0
    %v732 = vadd.f32 %v534, %v731
    %733 = vmatmul.bf16.gmra.mxu0 %v615
    %v734 = vpop.f32.mrf.mxu0
    %v735 = vadd.f32 %v534, %v734
    %v736 = vpop.f32.mrf.mxu0
    %v737 = vadd.f32 %v534, %v736
    %738 = vmatmul.bf16.gmra.mxu0 %v618
    %v739 = vpop.f32.mrf.mxu0
    %v740 = vadd.f32 %v534, %v739
    %v741 = vpop.f32.mrf.mxu0
    %v742 = vadd.f32 %v534, %v741
    %743 = vmatmul.bf16.gmra.mxu0 %v621
    %v744 = vpop.f32.mrf.mxu0
    %v745 = vadd.f32 %v534, %v744
    %v746 = vpop.f32.mrf.mxu0
    %v747 = vadd.f32 %v534, %v746
    %748 = vmatmul.bf16.gmra.mxu0 %v624
    %v749 = vpop.f32.mrf.mxu0
    %v750 = vadd.f32 %v534, %v749
    %v751 = vpop.f32.mrf.mxu0
    %v752 = vadd.f32 %v534, %v751
    %753 = vmatmul.bf16.gmra.mxu0 %v627
    %v754 = vpop.f32.mrf.mxu0
    %v755 = vadd.f32 %v534, %v754
    %v756 = vpop.f32.mrf.mxu0
    %v757 = vadd.f32 %v534, %v756
    %758 = vmatmul.bf16.gmra.mxu0 %v630
    %v759 = vpop.f32.mrf.mxu0
    %v760 = vadd.f32 %v534, %v759
    %v761 = vpop.f32.mrf.mxu0
    %v762 = vadd.f32 %v534, %v761
    %763 = vmatmul.bf16.gmra.mxu0 %v633
    %v764 = vpop.f32.mrf.mxu0
    %v765 = vadd.f32 %v534, %v764
    %v766 = vpop.f32.mrf.mxu0
    %v767 = vadd.f32 %v534, %v766
    %768 = vdwg.mxu0
    %v769 = vmax.f32 %v645, 0.0
    %v770 = vmax.f32 %v647, 0.0
    %v771 = vmax.f32 %v650, 0.0
    %v772 = vmax.f32 %v652, 0.0
    %v773 = vmax.f32 %v655, 0.0
    %v774 = vmax.f32 %v657, 0.0
    %v775 = vmax.f32 %v660, 0.0
    %v776 = vmax.f32 %v662, 0.0
    %v777 = vmax.f32 %v665, 0.0
    %v778 = vmax.f32 %v667, 0.0
    %v779 = vmax.f32 %v670, 0.0
    %v780 = vmax.f32 %v672, 0.0
    %v781 = vmax.f32 %v675, 0.0
    %v782 = vmax.f32 %v677, 0.0
    %v783 = vmax.f32 %v680, 0.0
    %v784 = vmax.f32 %v682, 0.0
    %v785 = vmax.f32 %v685, 0.0
    %v786 = vmax.f32 %v687, 0.0
    %v787 = vmax.f32 %v690, 0.0
    %v788 = vmax.f32 %v692, 0.0
    %v789 = vmax.f32 %v695, 0.0
    %v790 = vmax.f32 %v697, 0.0
    %v791 = vmax.f32 %v700, 0.0
    %v792 = vmax.f32 %v702, 0.0
    %v793 = vmax.f32 %v705, 0.0
    %v794 = vmax.f32 %v707, 0.0
    %v795 = vmax.f32 %v710, 0.0
    %v796 = vmax.f32 %v712, 0.0
    %v797 = vmax.f32 %v715, 0.0
    %v798 = vmax.f32 %v717, 0.0
    %v799 = vmax.f32 %v720, 0.0
    %v800 = vmax.f32 %v722, 0.0
    %v801 = vmax.f32 %v725, 0.0
    %v802 = vmax.f32 %v727, 0.0
    %v803 = vmax.f32 %v730, 0.0
    %v804 = vmax.f32 %v732, 0.0
    %v805 = vmax.f32 %v735, 0.0
    %v806 = vmax.f32 %v737, 0.0
    %v807 = vmax.f32 %v740, 0.0
    %v808 = vmax.f32 %v742, 0.0
    %v809 = vmax.f32 %v745, 0.0
    %v810 = vmax.f32 %v747, 0.0
    %v811 = vmax.f32 %v750, 0.0
    %v812 = vmax.f32 %v752, 0.0
    %v813 = vmax.f32 %v755, 0.0
    %v814 = vmax.f32 %v757, 0.0
    %v815 = vmax.f32 %v760, 0.0
    %v816 = vmax.f32 %v762, 0.0
    %v817 = vmax.f32 %v765, 0.0
    %v818 = vmax.f32 %v767, 0.0
    %v819 = vpack.c.bf16 %v770, %v769
    %v820 = vpack.c.bf16 %v772, %v771
    %v821 = vpack.c.bf16 %v774, %v773
    %v822 = vpack.c.bf16 %v776, %v775
    %v823 = vpack.c.bf16 %v778, %v777
    %v824 = vpack.c.bf16 %v780, %v779
    %v825 = vpack.c.bf16 %v782, %v781
    %v826 = vpack.c.bf16 %v784, %v783
    %v827 = vpack.c.bf16 %v786, %v785
    %v828 = vpack.c.bf16 %v788, %v787
    %v829 = vpack.c.bf16 %v790, %v789
    %v830 = vpack.c.bf16 %v792, %v791
    %v831 = vpack.c.bf16 %v794, %v793
    %v832 = vpack.c.bf16 %v796, %v795
    %v833 = vpack.c.bf16 %v798, %v797
    %v834 = vpack.c.bf16 %v800, %v799
    %v835 = vpack.c.bf16 %v802, %v801
    %v836 = vpack.c.bf16 %v804, %v803
    %v837 = vpack.c.bf16 %v806, %v805
    %v838 = vpack.c.bf16 %v808, %v807
    %v839 = vpack.c.bf16 %v810, %v809
    %v840 = vpack.c.bf16 %v812, %v811
    %v841 = vpack.c.bf16 %v814, %v813
    %v842 = vpack.c.bf16 %v816, %v815
    %v843 = vpack.c.bf16 %v818, %v817
    %v844 = vld [vmem:[%s5] sm:$0xf]
    %v845 = vld [vmem:[%s5 + $0x4] sm:$0xf]
    %v846 = vld [vmem:[%s5 + $0x8] sm:$0xf]
    %v847 = vld [vmem:[%s5 + $0xc] sm:$0xf]
    %v848 = vld [vmem:[%s5 + $0x10] sm:$0xf]
    %v849 = vld [vmem:[%s5 + $0x14] sm:$0xf]
    %v850 = vld [vmem:[%s5 + $0x18] sm:$0xf]
    %v851 = vld [vmem:[%s5 + $0x1c] sm:$0xf]
    %v852 = vld [vmem:[%s6] sm:$0x1]
    %v854 = vperm.slane %v852, 0
    %v864 = vunpack.c.l.b16 %v844
    %v865 = vunpack.c.l.b16 %v845
    %v866 = vunpack.c.l.b16 %v846
    %v867 = vunpack.c.l.b16 %v847
    %v868 = vunpack.c.l.b16 %v848
    %v869 = vunpack.c.l.b16 %v849
    %v870 = vunpack.c.l.b16 %v850
    %v871 = vunpack.c.l.b16 %v851
    %v872 = vpack.c.b16 %v865, %v864
    %v873 = vpack.c.b16 %v867, %v866
    %v874 = vpack.c.b16 %v869, %v868
    %v875 = vpack.c.b16 %v871, %v870
    %v881 = vsel %vm239, %v819, 0
    %v884 = vsel %vm239, %v820, 0
    %v887 = vsel %vm239, %v821, 0
    %v890 = vsel %vm239, %v822, 0
    %v893 = vsel %vm239, %v823, 0
    %v896 = vsel %vm239, %v824, 0
    %v899 = vsel %vm239, %v825, 0
    %v902 = vsel %vm239, %v826, 0
    %v905 = vsel %vm239, %v827, 0
    %v908 = vsel %vm239, %v828, 0
    %v911 = vsel %vm239, %v829, 0
    %v914 = vsel %vm239, %v830, 0
    %v917 = vsel %vm239, %v831, 0
    %v920 = vsel %vm239, %v832, 0
    %v923 = vsel %vm239, %v833, 0
    %v926 = vsel %vm239, %v834, 0
    %v929 = vsel %vm239, %v835, 0
    %v932 = vsel %vm239, %v836, 0
    %v935 = vsel %vm239, %v837, 0
    %v938 = vsel %vm239, %v838, 0
    %v941 = vsel %vm239, %v839, 0
    %v944 = vsel %vm239, %v840, 0
    %v947 = vsel %vm239, %v841, 0
    %v950 = vsel %vm239, %v842, 0
    %v953 = vsel %vm239, %v843, 0
    %955 = vmatpush.bf16.msra.mxu0 0
    %956 = vmatpush.bf16.msra.mxu0 0
    %957 = vmatpush.bf16.msra.mxu0 0
    %958 = vmatpush.bf16.msra.mxu0 0
    %959 = vmatpush.bf16.msra.mxu0 %v875
    %960 = vmatpush.bf16.msra.mxu0 %v874
    %961 = vmatpush.bf16.msra.mxu0 %v873
    %962 = vmatpush.bf16.msra.mxu0 %v872
    %963 = vmatmul.bf16.gmra.mxu0 %v881
    %v964 = vpop.f32.mrf.mxu0
    %v965 = vadd.f32 %v854, %v964
    %v966 = vpop.f32.mrf.mxu0
    %v967 = vadd.f32 %v854, %v966
    %968 = vmatmul.bf16.gmra.mxu0 %v884
    %v969 = vpop.f32.mrf.mxu0
    %v970 = vadd.f32 %v854, %v969
    %v971 = vpop.f32.mrf.mxu0
    %v972 = vadd.f32 %v854, %v971
    %973 = vmatmul.bf16.gmra.mxu0 %v887
    %v974 = vpop.f32.mrf.mxu0
    %v975 = vadd.f32 %v854, %v974
    %v976 = vpop.f32.mrf.mxu0
    %v977 = vadd.f32 %v854, %v976
    %978 = vmatmul.bf16.gmra.mxu0 %v890
    %v979 = vpop.f32.mrf.mxu0
    %v980 = vadd.f32 %v854, %v979
    %v981 = vpop.f32.mrf.mxu0
    %v982 = vadd.f32 %v854, %v981
    %983 = vmatmul.bf16.gmra.mxu0 %v893
    %v984 = vpop.f32.mrf.mxu0
    %v985 = vadd.f32 %v854, %v984
    %v986 = vpop.f32.mrf.mxu0
    %v987 = vadd.f32 %v854, %v986
    %988 = vmatmul.bf16.gmra.mxu0 %v896
    %v989 = vpop.f32.mrf.mxu0
    %v990 = vadd.f32 %v854, %v989
    %v991 = vpop.f32.mrf.mxu0
    %v992 = vadd.f32 %v854, %v991
    %993 = vmatmul.bf16.gmra.mxu0 %v899
    %v994 = vpop.f32.mrf.mxu0
    %v995 = vadd.f32 %v854, %v994
    %v996 = vpop.f32.mrf.mxu0
    %v997 = vadd.f32 %v854, %v996
    %998 = vmatmul.bf16.gmra.mxu0 %v902
    %v999 = vpop.f32.mrf.mxu0
    %v1000 = vadd.f32 %v854, %v999
    %v1001 = vpop.f32.mrf.mxu0
    %v1002 = vadd.f32 %v854, %v1001
    %1003 = vmatmul.bf16.gmra.mxu0 %v905
    %v1004 = vpop.f32.mrf.mxu0
    %v1005 = vadd.f32 %v854, %v1004
    %v1006 = vpop.f32.mrf.mxu0
    %v1007 = vadd.f32 %v854, %v1006
    %1008 = vmatmul.bf16.gmra.mxu0 %v908
    %v1009 = vpop.f32.mrf.mxu0
    %v1010 = vadd.f32 %v854, %v1009
    %v1011 = vpop.f32.mrf.mxu0
    %v1012 = vadd.f32 %v854, %v1011
    %1013 = vmatmul.bf16.gmra.mxu0 %v911
    %v1014 = vpop.f32.mrf.mxu0
    %v1015 = vadd.f32 %v854, %v1014
    %v1016 = vpop.f32.mrf.mxu0
    %v1017 = vadd.f32 %v854, %v1016
    %1018 = vmatmul.bf16.gmra.mxu0 %v914
    %v1019 = vpop.f32.mrf.mxu0
    %v1020 = vadd.f32 %v854, %v1019
    %v1021 = vpop.f32.mrf.mxu0
    %v1022 = vadd.f32 %v854, %v1021
    %1023 = vmatmul.bf16.gmra.mxu0 %v917
    %v1024 = vpop.f32.mrf.mxu0
    %v1025 = vadd.f32 %v854, %v1024
    %v1026 = vpop.f32.mrf.mxu0
    %v1027 = vadd.f32 %v854, %v1026
    %1028 = vmatmul.bf16.gmra.mxu0 %v920
    %v1029 = vpop.f32.mrf.mxu0
    %v1030 = vadd.f32 %v854, %v1029
    %v1031 = vpop.f32.mrf.mxu0
    %v1032 = vadd.f32 %v854, %v1031
    %1033 = vmatmul.bf16.gmra.mxu0 %v923
    %v1034 = vpop.f32.mrf.mxu0
    %v1035 = vadd.f32 %v854, %v1034
    %v1036 = vpop.f32.mrf.mxu0
    %v1037 = vadd.f32 %v854, %v1036
    %1038 = vmatmul.bf16.gmra.mxu0 %v926
    %v1039 = vpop.f32.mrf.mxu0
    %v1040 = vadd.f32 %v854, %v1039
    %v1041 = vpop.f32.mrf.mxu0
    %v1042 = vadd.f32 %v854, %v1041
    %1043 = vmatmul.bf16.gmra.mxu0 %v929
    %v1044 = vpop.f32.mrf.mxu0
    %v1045 = vadd.f32 %v854, %v1044
    %v1046 = vpop.f32.mrf.mxu0
    %v1047 = vadd.f32 %v854, %v1046
    %1048 = vmatmul.bf16.gmra.mxu0 %v932
    %v1049 = vpop.f32.mrf.mxu0
    %v1050 = vadd.f32 %v854, %v1049
    %v1051 = vpop.f32.mrf.mxu0
    %v1052 = vadd.f32 %v854, %v1051
    %1053 = vmatmul.bf16.gmra.mxu0 %v935
    %v1054 = vpop.f32.mrf.mxu0
    %v1055 = vadd.f32 %v854, %v1054
    %v1056 = vpop.f32.mrf.mxu0
    %v1057 = vadd.f32 %v854, %v1056
    %1058 = vmatmul.bf16.gmra.mxu0 %v938
    %v1059 = vpop.f32.mrf.mxu0
    %v1060 = vadd.f32 %v854, %v1059
    %v1061 = vpop.f32.mrf.mxu0
    %v1062 = vadd.f32 %v854, %v1061
    %1063 = vmatmul.bf16.gmra.mxu0 %v941
    %v1064 = vpop.f32.mrf.mxu0
    %v1065 = vadd.f32 %v854, %v1064
    %v1066 = vpop.f32.mrf.mxu0
    %v1067 = vadd.f32 %v854, %v1066
    %1068 = vmatmul.bf16.gmra.mxu0 %v944
    %v1069 = vpop.f32.mrf.mxu0
    %v1070 = vadd.f32 %v854, %v1069
    %v1071 = vpop.f32.mrf.mxu0
    %v1072 = vadd.f32 %v854, %v1071
    %1073 = vmatmul.bf16.gmra.mxu0 %v947
    %v1074 = vpop.f32.mrf.mxu0
    %v1075 = vadd.f32 %v854, %v1074
    %v1076 = vpop.f32.mrf.mxu0
    %v1077 = vadd.f32 %v854, %v1076
    %1078 = vmatmul.bf16.gmra.mxu0 %v950
    %v1079 = vpop.f32.mrf.mxu0
    %v1080 = vadd.f32 %v854, %v1079
    %v1081 = vpop.f32.mrf.mxu0
    %v1082 = vadd.f32 %v854, %v1081
    %1083 = vmatmul.bf16.gmra.mxu0 %v953
    %v1084 = vpop.f32.mrf.mxu0
    %v1085 = vadd.f32 %v854, %v1084
    %v1086 = vpop.f32.mrf.mxu0
    %v1087 = vadd.f32 %v854, %v1086
    %1088 = vdwg.mxu0
    %1089 = vst [vmem:[#allocation2] sm:$0xff] %v965
    %1090 = vst [vmem:[#allocation2 + $0x8] sm:$0xff] %v967
    %1091 = vst [vmem:[#allocation2 + $0x10] sm:$0xff] %v970
    %1092 = vst [vmem:[#allocation2 + $0x18] sm:$0xff] %v972
    %1093 = vst [vmem:[#allocation2 + $0x20] sm:$0xff] %v975
    %1094 = vst [vmem:[#allocation2 + $0x28] sm:$0xff] %v977
    %1095 = vst [vmem:[#allocation2 + $0x30] sm:$0xff] %v980
    %1096 = vst [vmem:[#allocation2 + $0x38] sm:$0xff] %v982
    %1097 = vst [vmem:[#allocation2 + $0x40] sm:$0xff] %v985
    %1098 = vst [vmem:[#allocation2 + $0x48] sm:$0xff] %v987
    %1099 = vst [vmem:[#allocation2 + $0x50] sm:$0xff] %v990
    %1100 = vst [vmem:[#allocation2 + $0x58] sm:$0xff] %v992
    %1101 = vst [vmem:[#allocation2 + $0x60] sm:$0xff] %v995
    %1102 = vst [vmem:[#allocation2 + $0x68] sm:$0xff] %v997
    %1103 = vst [vmem:[#allocation2 + $0x70] sm:$0xff] %v1000
    %1104 = vst [vmem:[#allocation2 + $0x78] sm:$0xff] %v1002
    %1105 = vst [vmem:[#allocation2 + $0x80] sm:$0xff] %v1005
    %1106 = vst [vmem:[#allocation2 + $0x88] sm:$0xff] %v1007
    %1107 = vst [vmem:[#allocation2 + $0x90] sm:$0xff] %v1010
    %1108 = vst [vmem:[#allocation2 + $0x98] sm:$0xff] %v1012
    %1109 = vst [vmem:[#allocation2 + $0xa0] sm:$0xff] %v1015
    %1110 = vst [vmem:[#allocation2 + $0xa8] sm:$0xff] %v1017
    %1111 = vst [vmem:[#allocation2 + $0xb0] sm:$0xff] %v1020
    %1112 = vst [vmem:[#allocation2 + $0xb8] sm:$0xff] %v1022
    %1113 = vst [vmem:[#allocation2 + $0xc0] sm:$0xff] %v1025
    %1114 = vst [vmem:[#allocation2 + $0xc8] sm:$0xff] %v1027
    %1115 = vst [vmem:[#allocation2 + $0xd0] sm:$0xff] %v1030
    %1116 = vst [vmem:[#allocation2 + $0xd8] sm:$0xff] %v1032
    %1117 = vst [vmem:[#allocation2 + $0xe0] sm:$0xff] %v1035
    %1118 = vst [vmem:[#allocation2 + $0xe8] sm:$0xff] %v1037
    %1119 = vst [vmem:[#allocation2 + $0xf0] sm:$0xff] %v1040
    %1120 = vst [vmem:[#allocation2 + $0xf8] sm:$0xff] %v1042
    %1121 = vst [vmem:[#allocation2 + $0x100] sm:$0xff] %v1045
    %1122 = vst [vmem:[#allocation2 + $0x108] sm:$0xff] %v1047
    %1123 = vst [vmem:[#allocation2 + $0x110] sm:$0xff] %v1050
    %1124 = vst [vmem:[#allocation2 + $0x118] sm:$0xff] %v1052
    %1125 = vst [vmem:[#allocation2 + $0x120] sm:$0xff] %v1055
    %1126 = vst [vmem:[#allocation2 + $0x128] sm:$0xff] %v1057
    %1127 = vst [vmem:[#allocation2 + $0x130] sm:$0xff] %v1060
    %1128 = vst [vmem:[#allocation2 + $0x138] sm:$0xff] %v1062
    %1129 = vst [vmem:[#allocation2 + $0x140] sm:$0xff] %v1065
    %1130 = vst [vmem:[#allocation2 + $0x148] sm:$0xff] %v1067
    %1131 = vst [vmem:[#allocation2 + $0x150] sm:$0xff] %v1070
    %1132 = vst [vmem:[#allocation2 + $0x158] sm:$0xff] %v1072
    %1133 = vst [vmem:[#allocation2 + $0x160] sm:$0xff] %v1075
    %1134 = vst [vmem:[#allocation2 + $0x168] sm:$0xff] %v1077
    %1135 = vst [vmem:[#allocation2 + $0x170] sm:$0xff] %v1080
    %1136 = vst [vmem:[#allocation2 + $0x178] sm:$0xff] %v1082
    %1137 = vst [vmem:[#allocation2 + $0x180] sm:$0xff] %v1085
    %1138 = vst [vmem:[#allocation2 + $0x188] sm:$0xff] %v1087
    // Predicated region
    $region30: #{tpu_custom_call.1} parent=1 // pred_check
      _
    $region31: #{tpu_custom_call.1} parent=1 // pred_check_branch
      %1140 = sbr.rel (0) target = $region33
    $region32: #{tpu_custom_call.1} parent=1 // pred_region
      %1142 = vsyncadd [#allocation3], 0
      %s1143 = sshll.u32 [#allocation2], 4
      %s1144 = int_to_ptr.vmem [resolvable:$true] %s1143
      %s1145 = sshll.u32 %s7, 4
      %s1146 = int_to_ptr.hbm [resolvable:$true] %s1145
      %1151 = dma.vmem_to_hbm [thread:$0]  %s1144, 6400, %s1146, [#allocation3], 128, 128, 8
    $region33: #{tpu_custom_call.1} parent=1 // pred_fallthru
      _
    // Predicated region
    $region34: #{tpu_custom_call.1} parent=1 // pred_check
      _
    $region35: #{tpu_custom_call.1} parent=1 // pred_check_branch
      %1153 = sbr.rel (0) target = $region37
    $region36: #{tpu_custom_call.1} parent=1 // pred_region
      %1155 = dma.done [#allocation3], 6400
    $region37: #{tpu_custom_call.1} parent=1 // pred_fallthru
      _
    %1156 = vsyncpa [#allocation3], 1

</llo_original>
